<compile_context>
chip_gen: v5e
topology: v5e:2x2
jax: 0.10.0
libtpu: 0.0.40
codegen_flags: <defaults>
</compile_context>

<pallas_src>
import jax
import jax.numpy as jnp
from jax import lax
from jax.experimental import pallas as pl
from jax.experimental.pallas import tpu as pltpu


def _round_up(x, m):
    return -(-x // m) * m


def _num_tensorcores_per_device():
    """Chips exposing 2 TensorCores per JAX device (v4/v5p megacore, v7x) can use a
    'parallel' batch axis; on 1-TC v5e/v6e splitting the batch is a pure loss."""
    try:
        kind = jax.devices()[0].device_kind.lower()
    except Exception:
        return 1
    if "v7" in kind or "v4" in kind or "v5p" in kind:
        return 2
    return 1


def _vmem_capacity_bytes():
    try:
        return int(pltpu.get_tpu_info().vmem_capacity_bytes)
    except Exception:
        return 64 << 20        # conservative fallback (v7x per-TC VMEM)


def _make_hcnn_chunk_kernel(n_obs, n_hid, obs_pad, n_sub, unroll):
    """Per-(batch_block, time_chunk) kernel.

    Cell with identity connector C = [Id 0]:
      expectation   x_hat_t = s_t[:, :n_obs]                          (lane slice)
      teacher force r_t     = s_t with first n_obs lanes set to obs_t (VPU select)
      transition    s_{t+1} = r_t + tanh(r_t) @ A + ext_{t+1} @ B
    Only s_states are written; Xions / out_clust are derived in the wrapper.
    """

    def kernel(s0_ref, a_hbm, b_hbm, obs_ref, ext_ref, s_out_ref,
               a_scr, b_scr, dma_sem, state_scr):
        c = pl.program_id(1)                       # time-chunk index (serial axis)

        @pl.when(c == 0)
        def _():
            # s_0 = initial_state + B ext_0 (the B ext_0 term is added in the wrapper).
            state_scr[...] = s0_ref[...]
            # Loop-invariant weights: DMA once per batch block into single-buffered
            # VMEM scratch instead of double-buffering them through the pipeline.
            ca = pltpu.make_async_copy(a_hbm, a_scr, dma_sem.at[0])
            cb = pltpu.make_async_copy(b_hbm, b_scr, dma_sem.at[1])
            ca.start()
            cb.start()
            ca.wait()
            cb.wait()

        a = a_scr[...]
        b = b_scr[...]
        n_steps = obs_ref.shape[0]
        bb = state_scr.shape[0]
        sb = bb // n_sub

        lane = lax.broadcasted_iota(jnp.int32, (sb, obs_pad), 1)
        tf_mask = lane < n_obs                     # observed lanes (C = [Id 0])

        def step(s_blk, obs_blk, ext_blk):
            # teacher forcing: replace the first n_obs lanes of s with obs
            if obs_pad == n_hid:
                r = jnp.where(tf_mask, obs_blk, s_blk)
            else:
                head = jnp.where(tf_mask, obs_blk, s_blk[:, :obs_pad])
                r = jnp.concatenate([head, s_blk[:, obs_pad:]], axis=-1)
            # transition: the two dots are independent, so the tiny-K ext matmul can
            # overlap with the A matmul fill/drain on the latency-bound chain.
            return (r
                    + jnp.dot(jnp.tanh(r), a, preferred_element_type=jnp.float32)
                    + jnp.dot(ext_blk, b, preferred_element_type=jnp.float32))

        def body(i, state):
            s_out_ref[i] = state                   # record s_t (pre-transition)
            obs_i = obs_ref[i]
            ext_i = ext_ref[i]
            if n_sub == 1:
                return step(state, obs_i, ext_i)
            # interleave independent batch sub-blocks to hide EUP/MXU latency
            parts = [step(state[j * sb:(j + 1) * sb],
                          obs_i[j * sb:(j + 1) * sb],
                          ext_i[j * sb:(j + 1) * sb])
                     for j in range(n_sub)]
            return jnp.concatenate(parts, axis=0)

        state_scr[...] = lax.fori_loop(0, n_steps, body, state_scr[...],
                                       unroll=unroll)

    return kernel


def lstm_formulation_climate_forward(initial_state_vec, data_window, a_w, b_w,
                                     n_obs, n_ext_vars, n_hid_vars,
                                     time_chunk=None, unroll=8):
    """Pallas-backed equivalent of LSTM_FormulationClimate.forward."""
    squeeze_batch = (data_window.ndim == 3)        # torch 3-D path: (seq, 1, F)
    if squeeze_batch:
        data_window = data_window[None]                             # (1, seq, 1, F)
        initial_state_vec = initial_state_vec.reshape(1, 1, n_hid_vars)

    B, T, _, F = data_window.shape
    dw = data_window.reshape(B, T, F).astype(jnp.float32)
    obs_bt = dw[:, :, :n_obs]                                       # (B, T, n_obs)
    ext_bt = dw[:, :, F - n_ext_vars:]                              # (B, T, n_ext)

    a32 = a_w.astype(jnp.float32)
    b32 = b_w.astype(jnp.float32)

    # s_0 = initial_state + B(ext_0)  (one tiny matmul in the wrapper)
    s_init = (initial_state_vec.reshape(B, n_hid_vars).astype(jnp.float32)
              + ext_bt[:, 0] @ b32)

    # ext stream carries ext_{t+1}; the final entry only feeds a transition whose
    # result is never reported, so zeros are fine.
    ext_next = jnp.concatenate(
        [ext_bt[:, 1:], jnp.zeros((B, 1, n_ext_vars), jnp.float32)], axis=1)

    # obs is padded only to the first 128-lane slab (or to n_hid when smaller),
    # not to n_hid: teacher forcing only ever touches n_obs lanes.
    if _round_up(n_obs, 128) >= n_hid_vars:
        obs_pad = n_hid_vars
    else:
        obs_pad = _round_up(n_obs, 128)
    if obs_pad > n_obs:
        obs_stream = jnp.pad(obs_bt, ((0, 0), (0, 0), (0, obs_pad - n_obs)))
    else:
        obs_stream = obs_bt

    # time-major streams -> dense (bb, lanes) loads and dense per-step output stores
    obs_tm = obs_stream.transpose(1, 0, 2)                          # (T, B, obs_pad)
    ext_tm = ext_next.transpose(1, 0, 2)                            # (T, B, n_ext)

    # ---- batch blocking: split only on 2-TC chips and only with >= 8 rows/block ----
    n_tc = _num_tensorcores_per_device()
    if n_tc > 1 and B % n_tc == 0 and (B // n_tc) % 8 == 0:
        bb = B // n_tc
    else:
        bb = B
    n_bblocks = B // bb

    # interleave two independent 8+-row sub-blocks when the block is big enough
    n_sub = 2 if (bb >= 16 and bb % 16 == 0) else 1

    # ---- time chunking sized from a per-chip VMEM budget ---------------------------
    pad8 = lambda x: _round_up(max(x, 1), 8)
    pad128 = lambda x: _round_up(max(x, 1), 128)
    vmem_cap = _vmem_capacity_bytes()
    fixed_bytes = 4 * (n_hid_vars * n_hid_vars                      # A scratch (1 buffer)
                       + pad8(n_ext_vars) * n_hid_vars              # B scratch
                       + pad8(bb) * pad128(n_hid_vars)              # recurrent state
                       + 2 * pad8(bb) * pad128(n_hid_vars))         # s_init blocks
    per_step_bytes = 4 * 2 * pad8(bb) * (pad128(obs_pad)
                                         + pad128(n_ext_vars)
                                         + pad128(n_hid_vars))      # double-buffered streams
    if time_chunk is None:
        budget = int(vmem_cap * 0.6)
        tc = (budget - fixed_bytes) // max(per_step_bytes, 1)
        tc = int(max(8, min(tc, 512)))
    else:
        tc = int(time_chunk)
    tc = max(1, min(tc, T))

    n_chunks = -(-T // tc)
    t_pad = n_chunks * tc
    if t_pad != T:
        pad = ((0, t_pad - T), (0, 0), (0, 0))
        obs_tm = jnp.pad(obs_tm, pad)
        ext_tm = jnp.pad(ext_tm, pad)
        # TODO(synk): padded tail steps are wasted serial work; gate with a
        # scalar-prefetched true chunk length if T % tc is routinely large.

    vmem_need = fixed_bytes + per_step_bytes * tc + (2 << 20)
    vmem_limit = int(min(vmem_cap - (4 << 20), max(2 * vmem_need, 48 << 20)))
    vmem_limit = max(vmem_limit, 32 << 20)

    kernel = _make_hcnn_chunk_kernel(
        n_obs, n_hid_vars, obs_pad, n_sub, unroll=max(1, min(unroll, tc)))

    s_states_tm = pl.pallas_call(
        kernel,
        out_shape=jax.ShapeDtypeStruct((t_pad, B, n_hid_vars), jnp.float32),
        grid_spec=pltpu.PrefetchScalarGridSpec(
            num_scalar_prefetch=0,
            grid=(n_bblocks, n_chunks),
            in_specs=[
                pl.BlockSpec((bb, n_hid_vars), lambda b, c: (b, 0)),        # s_init
                pl.BlockSpec(memory_space=pl.ANY),                          # A (HBM)
                pl.BlockSpec(memory_space=pl.ANY),                          # B (HBM)
                pl.BlockSpec((tc, bb, obs_pad), lambda b, c: (c, b, 0)),    # obs
                pl.BlockSpec((tc, bb, n_ext_vars), lambda b, c: (c, b, 0)), # ext_{t+1}
            ],
            out_specs=pl.BlockSpec((tc, bb, n_hid_vars), lambda b, c: (c, b, 0)),
            scratch_shapes=[
                pltpu.VMEM((n_hid_vars, n_hid_vars), jnp.float32),   # A (single buffer)
                pltpu.VMEM((n_ext_vars, n_hid_vars), jnp.float32),   # B (single buffer)
                pltpu.SemaphoreType.DMA((2,)),
                pltpu.VMEM((bb, n_hid_vars), jnp.float32),           # recurrent state
            ],
        ),
        compiler_params=pltpu.CompilerParams(
            dimension_semantics=("parallel", "arbitrary"),           # time is serial
            vmem_limit_bytes=vmem_limit),
    )(s_init, a32, b32, obs_tm, ext_tm)

    s_states_tm = s_states_tm[:T]                                    # (T, B, n_hid)

    if squeeze_batch:
        # time-major already matches the torch (seq, 1, n_hid) layout: no transpose.
        s_states = s_states_tm                                       # (T, 1, n_hid)
        xions = s_states[:, :, :n_obs]                               # C = [Id 0]
        out_clust = xions - obs_bt[0][:, None, :]
        return xions, out_clust, s_states

    # Batched path: one (T,B,n_hid)->(B,T,n_hid) transpose remains (dense in-kernel
    # stores were preferred over per-step sublane-strided batch-major stores).
    s_states_bt = s_states_tm.transpose(1, 0, 2)                     # (B, T, n_hid)
    xions_bt = s_states_bt[..., :n_obs]
    clust_bt = xions_bt - obs_bt
    to4 = lambda x: x[:, :, None, :]
    return to4(xions_bt), to4(clust_bt), to4(s_states_bt)


def reference_forward(initial_state_vec, data_window, a_w, b_w,
                      n_obs, n_ext_vars, n_hid_vars):
    """Pure-JAX mirror of the PyTorch loop (batched 4-D path) for verification."""
    B, T, _, F = data_window.shape
    dw = data_window.reshape(B, T, F).astype(jnp.float32)
    obs = dw[:, :, :n_obs]
    ext = dw[:, :, F - n_ext_vars:]
    C = jnp.eye(n_obs, n_hid_vars, dtype=jnp.float32)
    s = initial_state_vec.reshape(B, n_hid_vars) + ext[:, 0] @ b_w
    xs, cl, ss = [], [], []
    for t in range(T):
        ss.append(s)
        x_hat = s @ C.T
        delta = x_hat - obs[:, t]
        xs.append(x_hat)
        cl.append(delta)
        if t < T - 1:
            r = s - delta @ C
            s = r + jnp.tanh(r) @ a_w + ext[:, t + 1] @ b_w
    stack = lambda lst: jnp.stack(lst, axis=1)[:, :, None, :]
    return stack(xs), stack(cl), stack(ss)


if __name__ == "__main__":
    # small shapes consistent with the module's batched (4-D) forward
    n_obs, n_ext_vars, n_hid_vars = 4, 3, 32
    batch, seq = 2, 8
    F = n_obs + n_ext_vars

    key = jax.random.PRNGKey(0)
    k_data, k_s0, k_a, k_b = jax.random.split(key, 4)

    data_window = jax.random.normal(k_data, (batch, seq, 1, F), dtype=jnp.float32)
    # s0_nature='random_': uniform(-0.75, 0.75), shape (batch, 1, n_hid)
    initial_state_vec = jax.random.uniform(
        k_s0, (batch, 1, n_hid_vars), minval=-0.75, maxval=0.75, dtype=jnp.float32)

    # deterministic synthetic cell parameters (nn.Linear-like, bias=False)
    a_w = jax.random.normal(k_a, (n_hid_vars, n_hid_vars), dtype=jnp.float32) \
        * (1.0 / jnp.sqrt(n_hid_vars))
    b_w = jax.random.normal(k_b, (n_ext_vars, n_hid_vars), dtype=jnp.float32) \
        * (1.0 / jnp.sqrt(n_ext_vars))

    rX, rC, rS = reference_forward(
        initial_state_vec, data_window, a_w, b_w, n_obs, n_ext_vars, n_hid_vars)

    # (1) batched path, default (budget-sized) chunking
    X1, C1, S1 = lstm_formulation_climate_forward(
        initial_state_vec, data_window, a_w, b_w, n_obs, n_ext_vars, n_hid_vars)
    jax.block_until_ready((X1, C1, S1))
    assert X1.shape == (batch, seq, 1, n_obs)
    assert C1.shape == (batch, seq, 1, n_obs)
    assert S1.shape == (batch, seq, 1, n_hid_vars)
    assert jnp.allclose(X1, rX, atol=1e-5, rtol=1e-5)
    assert jnp.allclose(C1, rC, atol=1e-5, rtol=1e-5)
    assert jnp.allclose(S1, rS, atol=1e-5, rtol=1e-5)

    # (2) multi-chunk + time-padding path (chunk size does not divide seq)
    X2, C2, S2 = lstm_formulation_climate_forward(
        initial_state_vec, data_window, a_w, b_w, n_obs, n_ext_vars, n_hid_vars,
        time_chunk=3)
    jax.block_until_ready((X2, C2, S2))
    assert jnp.allclose(X2, rX, atol=1e-5, rtol=1e-5)
    assert jnp.allclose(C2, rC, atol=1e-5, rtol=1e-5)
    assert jnp.allclose(S2, rS, atol=1e-5, rtol=1e-5)

    # (3) un-batched 3-D path: data_window (seq, 1, F), s0 (1, n_hid) — no transpose
    X3, C3, S3 = lstm_formulation_climate_forward(
        initial_state_vec[0], data_window[0], a_w, b_w,
        n_obs, n_ext_vars, n_hid_vars)
    jax.block_until_ready((X3, C3, S3))
    assert X3.shape == (seq, 1, n_obs)
    assert S3.shape == (seq, 1, n_hid_vars)
    assert jnp.allclose(X3, rX[0], atol=1e-5, rtol=1e-5)
    assert jnp.allclose(C3, rC[0], atol=1e-5, rtol=1e-5)
    assert jnp.allclose(S3, rS[0], atol=1e-5, rtol=1e-5)

    # (4) larger hidden/batch: exercises the narrow-obs (obs_pad < n_hid) teacher-
    #     forcing slab and, depending on chip, the batch split / sub-block interleave.
    n_hid_big, batch_big, seq_big = 256, 16, 10
    kd2, ks2, ka2, kb2 = jax.random.split(jax.random.PRNGKey(1), 4)
    dw_big = jax.random.normal(kd2, (batch_big, seq_big, 1, F), dtype=jnp.float32)
    s0_big = jax.random.uniform(ks2, (batch_big, 1, n_hid_big),
                                minval=-0.75, maxval=0.75, dtype=jnp.float32)
    a_big = jax.random.normal(ka2, (n_hid_big, n_hid_big), dtype=jnp.float32) \
        * (0.5 / jnp.sqrt(n_hid_big))
    b_big = jax.random.normal(kb2, (n_ext_vars, n_hid_big), dtype=jnp.float32) \
        * (1.0 / jnp.sqrt(n_ext_vars))
    rX4, rC4, rS4 = reference_forward(
        s0_big, dw_big, a_big, b_big, n_obs, n_ext_vars, n_hid_big)
    X4, C4, S4 = lstm_formulation_climate_forward(
        s0_big, dw_big, a_big, b_big, n_obs, n_ext_vars, n_hid_big)
    jax.block_until_ready((X4, C4, S4))
    assert S4.shape == (batch_big, seq_big, 1, n_hid_big)
    assert jnp.allclose(X4, rX4, atol=1e-3, rtol=1e-3)
    assert jnp.allclose(C4, rC4, atol=1e-3, rtol=1e-3)
    assert jnp.allclose(S4, rS4, atol=1e-3, rtol=1e-3)

    print("KERNEL_OK")
</pallas_src>

<mosaic_0001>
module attributes {stable_mosaic.version = 11 : i64} {
  func.func @kernel(%arg0: i32, %arg1: i32, %arg2: memref<2x32xf32, #tpu.memory_space<vmem>>, %arg3: memref<32x32xf32, #tpu.memory_space<any>>, %arg4: memref<3x32xf32, #tpu.memory_space<any>>, %arg5: memref<8x2x32xf32, #tpu.memory_space<vmem>>, %arg6: memref<8x2x3xf32, #tpu.memory_space<vmem>>, %arg7: memref<8x2x32xf32, #tpu.memory_space<vmem>>, %arg8: memref<32x32xf32, #tpu.memory_space<vmem>>, %arg9: memref<3x32xf32, #tpu.memory_space<vmem>>, %arg10: memref<2x!tpu.dma_semaphore, #tpu.memory_space<semaphore_mem>>, %arg11: memref<2x32xf32, #tpu.memory_space<vmem>>) attributes {dimension_semantics = [#tpu.dimension_semantics<parallel>, #tpu.dimension_semantics<arbitrary>], iteration_bounds = array<i64: 1, 1>, scalar_prefetch = 0 : i64, scratch_operands = 4 : i64, tpu.core_type = #tpu.core_type<tc>, window_params = [{transform_indices = @transform_0, window_bounds = array<i64: 2, 32>}, {}, {}, {transform_indices = @transform_3, window_bounds = array<i64: 8, 2, 32>}, {transform_indices = @transform_4, window_bounds = array<i64: 8, 2, 3>}, {transform_indices = @transform_5, window_bounds = array<i64: 8, 2, 32>}]} {
    %c0_i32 = arith.constant 0 : i32
    %0 = arith.cmpi eq, %arg1, %c0_i32 : i32
    %1 = arith.extui %0 : i1 to i32
    %c0_i32_0 = arith.constant 0 : i32
    %2 = arith.cmpi ne, %1, %c0_i32_0 : i32
    scf.if %2 {
      %c0_73 = arith.constant 0 : index
      %c0_74 = arith.constant 0 : index
      %138 = vector.load %arg2[%c0_73, %c0_74] : memref<2x32xf32, #tpu.memory_space<vmem>>, vector<2x32xf32>
      %c0_75 = arith.constant 0 : index
      %c0_76 = arith.constant 0 : index
      %139 = vector.load %arg11[%c0_75, %c0_76] : memref<2x32xf32, #tpu.memory_space<vmem>>, vector<2x32xf32>
      tpu.vector_store %arg11[%c0_75, %c0_76], %138 {strides = array<i32>} : memref<2x32xf32, #tpu.memory_space<vmem>>, vector<2x32xf32>,
      %c0_i32_77 = arith.constant 0 : i32
      %140 = tpu.memref_slice %arg10[%c0_i32_77] : memref<2x!tpu.dma_semaphore, #tpu.memory_space<semaphore_mem>> -> memref<1x!tpu.dma_semaphore, #tpu.memory_space<semaphore_mem>>
      %141 = tpu.memref_squeeze %140 : memref<1x!tpu.dma_semaphore, #tpu.memory_space<semaphore_mem>> -> memref<!tpu.dma_semaphore, #tpu.memory_space<semaphore_mem>>
      tpu.enqueue_dma source(%arg3 : memref<32x32xf32, #tpu.memory_space<any>>) target(%arg8 : memref<32x32xf32, #tpu.memory_space<vmem>>) target_semaphore(%141 : memref<!tpu.dma_semaphore, #tpu.memory_space<semaphore_mem>>)
      %c1_i32_78 = arith.constant 1 : i32
      %142 = tpu.memref_slice %arg10[%c1_i32_78] : memref<2x!tpu.dma_semaphore, #tpu.memory_space<semaphore_mem>> -> memref<1x!tpu.dma_semaphore, #tpu.memory_space<semaphore_mem>>
      %143 = tpu.memref_squeeze %142 : memref<1x!tpu.dma_semaphore, #tpu.memory_space<semaphore_mem>> -> memref<!tpu.dma_semaphore, #tpu.memory_space<semaphore_mem>>
      tpu.enqueue_dma source(%arg4 : memref<3x32xf32, #tpu.memory_space<any>>) target(%arg9 : memref<3x32xf32, #tpu.memory_space<vmem>>) target_semaphore(%143 : memref<!tpu.dma_semaphore, #tpu.memory_space<semaphore_mem>>)
      %c0_i32_79 = arith.constant 0 : i32
      %144 = tpu.memref_slice %arg10[%c0_i32_79] : memref<2x!tpu.dma_semaphore, #tpu.memory_space<semaphore_mem>> -> memref<1x!tpu.dma_semaphore, #tpu.memory_space<semaphore_mem>>
      %145 = tpu.memref_squeeze %144 : memref<1x!tpu.dma_semaphore, #tpu.memory_space<semaphore_mem>> -> memref<!tpu.dma_semaphore, #tpu.memory_space<semaphore_mem>>
      tpu.wait_dma2 semaphore(%145 : memref<!tpu.dma_semaphore, #tpu.memory_space<semaphore_mem>>) src(%arg3 : memref<32x32xf32, #tpu.memory_space<any>>) dst(%arg8 : memref<32x32xf32, #tpu.memory_space<vmem>>)
      %c1_i32_80 = arith.constant 1 : i32
      %146 = tpu.memref_slice %arg10[%c1_i32_80] : memref<2x!tpu.dma_semaphore, #tpu.memory_space<semaphore_mem>> -> memref<1x!tpu.dma_semaphore, #tpu.memory_space<semaphore_mem>>
      %147 = tpu.memref_squeeze %146 : memref<1x!tpu.dma_semaphore, #tpu.memory_space<semaphore_mem>> -> memref<!tpu.dma_semaphore, #tpu.memory_space<semaphore_mem>>
      tpu.wait_dma2 semaphore(%147 : memref<!tpu.dma_semaphore, #tpu.memory_space<semaphore_mem>>) src(%arg4 : memref<3x32xf32, #tpu.memory_space<any>>) dst(%arg9 : memref<3x32xf32, #tpu.memory_space<vmem>>)
    } else {
    }
    %c0 = arith.constant 0 : index
    %c0_1 = arith.constant 0 : index
    %3 = vector.load %arg8[%c0, %c0_1] : memref<32x32xf32, #tpu.memory_space<vmem>>, vector<32x32xf32>
    %c0_2 = arith.constant 0 : index
    %c0_3 = arith.constant 0 : index
    %4 = vector.load %arg9[%c0_2, %c0_3] : memref<3x32xf32, #tpu.memory_space<vmem>>, vector<3x32xf32>
    %5 = tpu.iota {dimensions = array<i32: 1>} : vector<2x32xi32>
    %c4_i32 = arith.constant 4 : i32
    %6 = vector.broadcast %c4_i32 : i32 to vector<2x32xi32>
    %7 = arith.cmpi slt, %5, %6 : vector<2x32xi32>
    %c0_4 = arith.constant 0 : index
    %c0_5 = arith.constant 0 : index
    %8 = vector.load %arg11[%c0_4, %c0_5] : memref<2x32xf32, #tpu.memory_space<vmem>>, vector<2x32xf32>
    %c0_i32_6 = arith.constant 0 : i32
    %9 = arith.index_cast %c0_i32_6 : i32 to index
    %c0_7 = arith.constant 0 : index
    %c0_8 = arith.constant 0 : index
    %10 = vector.load %arg7[%9, %c0_7, %c0_8] : memref<8x2x32xf32, #tpu.memory_space<vmem>>, vector<1x2x32xf32>
    %11 = vector.shape_cast %10 : vector<1x2x32xf32> to vector<2x32xf32>
    %12 = vector.shape_cast %8 : vector<2x32xf32> to vector<1x2x32xf32>
    tpu.vector_store %arg7[%9, %c0_7, %c0_8], %12 {strides = array<i32>} : memref<8x2x32xf32, #tpu.memory_space<vmem>>, vector<1x2x32xf32>,
    %13 = arith.index_cast %c0_i32_6 : i32 to index
    %c0_9 = arith.constant 0 : index
    %c0_10 = arith.constant 0 : index
    %14 = vector.load %arg5[%13, %c0_9, %c0_10] : memref<8x2x32xf32, #tpu.memory_space<vmem>>, vector<1x2x32xf32>
    %15 = vector.shape_cast %14 : vector<1x2x32xf32> to vector<2x32xf32>
    %16 = arith.index_cast %c0_i32_6 : i32 to index
    %c0_11 = arith.constant 0 : index
    %c0_12 = arith.constant 0 : index
    %17 = vector.load %arg6[%16, %c0_11, %c0_12] : memref<8x2x3xf32, #tpu.memory_space<vmem>>, vector<1x2x3xf32>
    %18 = vector.shape_cast %17 : vector<1x2x3xf32> to vector<2x3xf32>
    %19 = arith.select %7, %15, %8 : vector<2x32xi1>, vector<2x32xf32>
    %20 = math.tanh %19 : vector<2x32xf32>
    %cst = arith.constant dense<0.000000e+00> : vector<2x32xf32>
    %21 = tpu.matmul %20, %3, %cst {dimension_numbers = #tpu.dot_dimension_numbers<[1], [0], [0], [1], [0, 0, 1, 1], [], []>} : vector<2x32xf32>, vector<32x32xf32>, vector<2x32xf32> -> vector<2x32xf32>
    %22 = arith.addf %19, %21 : vector<2x32xf32>
    %cst_13 = arith.constant dense<0.000000e+00> : vector<2x32xf32>
    %23 = tpu.matmul %18, %4, %cst_13 {dimension_numbers = #tpu.dot_dimension_numbers<[1], [0], [0], [1], [0, 0, 1, 1], [], []>} : vector<2x3xf32>, vector<3x32xf32>, vector<2x32xf32> -> vector<2x32xf32>
    %24 = arith.addf %22, %23 : vector<2x32xf32>
    %c1_i32 = arith.constant 1 : i32
    %25 = arith.index_cast %c1_i32 : i32 to index
    %c0_14 = arith.constant 0 : index
    %c0_15 = arith.constant 0 : index
    %26 = vector.load %arg7[%25, %c0_14, %c0_15] : memref<8x2x32xf32, #tpu.memory_space<vmem>>, vector<1x2x32xf32>
    %27 = vector.shape_cast %26 : vector<1x2x32xf32> to vector<2x32xf32>
    %28 = vector.shape_cast %24 : vector<2x32xf32> to vector<1x2x32xf32>
    tpu.vector_store %arg7[%25, %c0_14, %c0_15], %28 {strides = array<i32>} : memref<8x2x32xf32, #tpu.memory_space<vmem>>, vector<1x2x32xf32>,
    %29 = arith.index_cast %c1_i32 : i32 to index
    %c0_16 = arith.constant 0 : index
    %c0_17 = arith.constant 0 : index
    %30 = vector.load %arg5[%29, %c0_16, %c0_17] : memref<8x2x32xf32, #tpu.memory_space<vmem>>, vector<1x2x32xf32>
    %31 = vector.shape_cast %30 : vector<1x2x32xf32> to vector<2x32xf32>
    %32 = arith.index_cast %c1_i32 : i32 to index
    %c0_18 = arith.constant 0 : index
    %c0_19 = arith.constant 0 : index
    %33 = vector.load %arg6[%32, %c0_18, %c0_19] : memref<8x2x3xf32, #tpu.memory_space<vmem>>, vector<1x2x3xf32>
    %34 = vector.shape_cast %33 : vector<1x2x3xf32> to vector<2x3xf32>
    %35 = arith.select %7, %31, %24 : vector<2x32xi1>, vector<2x32xf32>
    %36 = math.tanh %35 : vector<2x32xf32>
    %cst_20 = arith.constant dense<0.000000e+00> : vector<2x32xf32>
    %37 = tpu.matmul %36, %3, %cst_20 {dimension_numbers = #tpu.dot_dimension_numbers<[1], [0], [0], [1], [0, 0, 1, 1], [], []>} : vector<2x32xf32>, vector<32x32xf32>, vector<2x32xf32> -> vector<2x32xf32>
    %38 = arith.addf %35, %37 : vector<2x32xf32>
    %cst_21 = arith.constant dense<0.000000e+00> : vector<2x32xf32>
    %39 = tpu.matmul %34, %4, %cst_21 {dimension_numbers = #tpu.dot_dimension_numbers<[1], [0], [0], [1], [0, 0, 1, 1], [], []>} : vector<2x3xf32>, vector<3x32xf32>, vector<2x32xf32> -> vector<2x32xf32>
    %40 = arith.addf %38, %39 : vector<2x32xf32>
    %c2_i32 = arith.constant 2 : i32
    %41 = arith.index_cast %c2_i32 : i32 to index
    %c0_22 = arith.constant 0 : index
    %c0_23 = arith.constant 0 : index
    %42 = vector.load %arg7[%41, %c0_22, %c0_23] : memref<8x2x32xf32, #tpu.memory_space<vmem>>, vector<1x2x32xf32>
    %43 = vector.shape_cast %42 : vector<1x2x32xf32> to vector<2x32xf32>
    %44 = vector.shape_cast %40 : vector<2x32xf32> to vector<1x2x32xf32>
    tpu.vector_store %arg7[%41, %c0_22, %c0_23], %44 {strides = array<i32>} : memref<8x2x32xf32, #tpu.memory_space<vmem>>, vector<1x2x32xf32>,
    %45 = arith.index_cast %c2_i32 : i32 to index
    %c0_24 = arith.constant 0 : index
    %c0_25 = arith.constant 0 : index
    %46 = vector.load %arg5[%45, %c0_24, %c0_25] : memref<8x2x32xf32, #tpu.memory_space<vmem>>, vector<1x2x32xf32>
    %47 = vector.shape_cast %46 : vector<1x2x32xf32> to vector<2x32xf32>
    %48 = arith.index_cast %c2_i32 : i32 to index
    %c0_26 = arith.constant 0 : index
    %c0_27 = arith.constant 0 : index
    %49 = vector.load %arg6[%48, %c0_26, %c0_27] : memref<8x2x3xf32, #tpu.memory_space<vmem>>, vector<1x2x3xf32>
    %50 = vector.shape_cast %49 : vector<1x2x3xf32> to vector<2x3xf32>
    %51 = arith.select %7, %47, %40 : vector<2x32xi1>, vector<2x32xf32>
    %52 = math.tanh %51 : vector<2x32xf32>
    %cst_28 = arith.constant dense<0.000000e+00> : vector<2x32xf32>
    %53 = tpu.matmul %52, %3, %cst_28 {dimension_numbers = #tpu.dot_dimension_numbers<[1], [0], [0], [1], [0, 0, 1, 1], [], []>} : vector<2x32xf32>, vector<32x32xf32>, vector<2x32xf32> -> vector<2x32xf32>
    %54 = arith.addf %51, %53 : vector<2x32xf32>
    %cst_29 = arith.constant dense<0.000000e+00> : vector<2x32xf32>
    %55 = tpu.matmul %50, %4, %cst_29 {dimension_numbers = #tpu.dot_dimension_numbers<[1], [0], [0], [1], [0, 0, 1, 1], [], []>} : vector<2x3xf32>, vector<3x32xf32>, vector<2x32xf32> -> vector<2x32xf32>
    %56 = arith.addf %54, %55 : vector<2x32xf32>
    %c3_i32 = arith.constant 3 : i32
    %57 = arith.index_cast %c3_i32 : i32 to index
    %c0_30 = arith.constant 0 : index
    %c0_31 = arith.constant 0 : index
    %58 = vector.load %arg7[%57, %c0_30, %c0_31] : memref<8x2x32xf32, #tpu.memory_space<vmem>>, vector<1x2x32xf32>
    %59 = vector.shape_cast %58 : vector<1x2x32xf32> to vector<2x32xf32>
    %60 = vector.shape_cast %56 : vector<2x32xf32> to vector<1x2x32xf32>
    tpu.vector_store %arg7[%57, %c0_30, %c0_31], %60 {strides = array<i32>} : memref<8x2x32xf32, #tpu.memory_space<vmem>>, vector<1x2x32xf32>,
    %61 = arith.index_cast %c3_i32 : i32 to index
    %c0_32 = arith.constant 0 : index
    %c0_33 = arith.constant 0 : index
    %62 = vector.load %arg5[%61, %c0_32, %c0_33] : memref<8x2x32xf32, #tpu.memory_space<vmem>>, vector<1x2x32xf32>
    %63 = vector.shape_cast %62 : vector<1x2x32xf32> to vector<2x32xf32>
    %64 = arith.index_cast %c3_i32 : i32 to index
    %c0_34 = arith.constant 0 : index
    %c0_35 = arith.constant 0 : index
    %65 = vector.load %arg6[%64, %c0_34, %c0_35] : memref<8x2x3xf32, #tpu.memory_space<vmem>>, vector<1x2x3xf32>
    %66 = vector.shape_cast %65 : vector<1x2x3xf32> to vector<2x3xf32>
    %67 = arith.select %7, %63, %56 : vector<2x32xi1>, vector<2x32xf32>
    %68 = math.tanh %67 : vector<2x32xf32>
    %cst_36 = arith.constant dense<0.000000e+00> : vector<2x32xf32>
    %69 = tpu.matmul %68, %3, %cst_36 {dimension_numbers = #tpu.dot_dimension_numbers<[1], [0], [0], [1], [0, 0, 1, 1], [], []>} : vector<2x32xf32>, vector<32x32xf32>, vector<2x32xf32> -> vector<2x32xf32>
    %70 = arith.addf %67, %69 : vector<2x32xf32>
    %cst_37 = arith.constant dense<0.000000e+00> : vector<2x32xf32>
    %71 = tpu.matmul %66, %4, %cst_37 {dimension_numbers = #tpu.dot_dimension_numbers<[1], [0], [0], [1], [0, 0, 1, 1], [], []>} : vector<2x3xf32>, vector<3x32xf32>, vector<2x32xf32> -> vector<2x32xf32>
    %72 = arith.addf %70, %71 : vector<2x32xf32>
    %c4_i32_38 = arith.constant 4 : i32
    %73 = arith.index_cast %c4_i32_38 : i32 to index
    %c0_39 = arith.constant 0 : index
    %c0_40 = arith.constant 0 : index
    %74 = vector.load %arg7[%73, %c0_39, %c0_40] : memref<8x2x32xf32, #tpu.memory_space<vmem>>, vector<1x2x32xf32>
    %75 = vector.shape_cast %74 : vector<1x2x32xf32> to vector<2x32xf32>
    %76 = vector.shape_cast %72 : vector<2x32xf32> to vector<1x2x32xf32>
    tpu.vector_store %arg7[%73, %c0_39, %c0_40], %76 {strides = array<i32>} : memref<8x2x32xf32, #tpu.memory_space<vmem>>, vector<1x2x32xf32>,
    %77 = arith.index_cast %c4_i32_38 : i32 to index
    %c0_41 = arith.constant 0 : index
    %c0_42 = arith.constant 0 : index
    %78 = vector.load %arg5[%77, %c0_41, %c0_42] : memref<8x2x32xf32, #tpu.memory_space<vmem>>, vector<1x2x32xf32>
    %79 = vector.shape_cast %78 : vector<1x2x32xf32> to vector<2x32xf32>
    %80 = arith.index_cast %c4_i32_38 : i32 to index
    %c0_43 = arith.constant 0 : index
    %c0_44 = arith.constant 0 : index
    %81 = vector.load %arg6[%80, %c0_43, %c0_44] : memref<8x2x3xf32, #tpu.memory_space<vmem>>, vector<1x2x3xf32>
    %82 = vector.shape_cast %81 : vector<1x2x3xf32> to vector<2x3xf32>
    %83 = arith.select %7, %79, %72 : vector<2x32xi1>, vector<2x32xf32>
    %84 = math.tanh %83 : vector<2x32xf32>
    %cst_45 = arith.constant dense<0.000000e+00> : vector<2x32xf32>
    %85 = tpu.matmul %84, %3, %cst_45 {dimension_numbers = #tpu.dot_dimension_numbers<[1], [0], [0], [1], [0, 0, 1, 1], [], []>} : vector<2x32xf32>, vector<32x32xf32>, vector<2x32xf32> -> vector<2x32xf32>
    %86 = arith.addf %83, %85 : vector<2x32xf32>
    %cst_46 = arith.constant dense<0.000000e+00> : vector<2x32xf32>
    %87 = tpu.matmul %82, %4, %cst_46 {dimension_numbers = #tpu.dot_dimension_numbers<[1], [0], [0], [1], [0, 0, 1, 1], [], []>} : vector<2x3xf32>, vector<3x32xf32>, vector<2x32xf32> -> vector<2x32xf32>
    %88 = arith.addf %86, %87 : vector<2x32xf32>
    %c5_i32 = arith.constant 5 : i32
    %89 = arith.index_cast %c5_i32 : i32 to index
    %c0_47 = arith.constant 0 : index
    %c0_48 = arith.constant 0 : index
    %90 = vector.load %arg7[%89, %c0_47, %c0_48] : memref<8x2x32xf32, #tpu.memory_space<vmem>>, vector<1x2x32xf32>
    %91 = vector.shape_cast %90 : vector<1x2x32xf32> to vector<2x32xf32>
    %92 = vector.shape_cast %88 : vector<2x32xf32> to vector<1x2x32xf32>
    tpu.vector_store %arg7[%89, %c0_47, %c0_48], %92 {strides = array<i32>} : memref<8x2x32xf32, #tpu.memory_space<vmem>>, vector<1x2x32xf32>,
    %93 = arith.index_cast %c5_i32 : i32 to index
    %c0_49 = arith.constant 0 : index
    %c0_50 = arith.constant 0 : index
    %94 = vector.load %arg5[%93, %c0_49, %c0_50] : memref<8x2x32xf32, #tpu.memory_space<vmem>>, vector<1x2x32xf32>
    %95 = vector.shape_cast %94 : vector<1x2x32xf32> to vector<2x32xf32>
    %96 = arith.index_cast %c5_i32 : i32 to index
    %c0_51 = arith.constant 0 : index
    %c0_52 = arith.constant 0 : index
    %97 = vector.load %arg6[%96, %c0_51, %c0_52] : memref<8x2x3xf32, #tpu.memory_space<vmem>>, vector<1x2x3xf32>
    %98 = vector.shape_cast %97 : vector<1x2x3xf32> to vector<2x3xf32>
    %99 = arith.select %7, %95, %88 : vector<2x32xi1>, vector<2x32xf32>
    %100 = math.tanh %99 : vector<2x32xf32>
    %cst_53 = arith.constant dense<0.000000e+00> : vector<2x32xf32>
    %101 = tpu.matmul %100, %3, %cst_53 {dimension_numbers = #tpu.dot_dimension_numbers<[1], [0], [0], [1], [0, 0, 1, 1], [], []>} : vector<2x32xf32>, vector<32x32xf32>, vector<2x32xf32> -> vector<2x32xf32>
    %102 = arith.addf %99, %101 : vector<2x32xf32>
    %cst_54 = arith.constant dense<0.000000e+00> : vector<2x32xf32>
    %103 = tpu.matmul %98, %4, %cst_54 {dimension_numbers = #tpu.dot_dimension_numbers<[1], [0], [0], [1], [0, 0, 1, 1], [], []>} : vector<2x3xf32>, vector<3x32xf32>, vector<2x32xf32> -> vector<2x32xf32>
    %104 = arith.addf %102, %103 : vector<2x32xf32>
    %c6_i32 = arith.constant 6 : i32
    %105 = arith.index_cast %c6_i32 : i32 to index
    %c0_55 = arith.constant 0 : index
    %c0_56 = arith.constant 0 : index
    %106 = vector.load %arg7[%105, %c0_55, %c0_56] : memref<8x2x32xf32, #tpu.memory_space<vmem>>, vector<1x2x32xf32>
    %107 = vector.shape_cast %106 : vector<1x2x32xf32> to vector<2x32xf32>
    %108 = vector.shape_cast %104 : vector<2x32xf32> to vector<1x2x32xf32>
    tpu.vector_store %arg7[%105, %c0_55, %c0_56], %108 {strides = array<i32>} : memref<8x2x32xf32, #tpu.memory_space<vmem>>, vector<1x2x32xf32>,
    %109 = arith.index_cast %c6_i32 : i32 to index
    %c0_57 = arith.constant 0 : index
    %c0_58 = arith.constant 0 : index
    %110 = vector.load %arg5[%109, %c0_57, %c0_58] : memref<8x2x32xf32, #tpu.memory_space<vmem>>, vector<1x2x32xf32>
    %111 = vector.shape_cast %110 : vector<1x2x32xf32> to vector<2x32xf32>
    %112 = arith.index_cast %c6_i32 : i32 to index
    %c0_59 = arith.constant 0 : index
    %c0_60 = arith.constant 0 : index
    %113 = vector.load %arg6[%112, %c0_59, %c0_60] : memref<8x2x3xf32, #tpu.memory_space<vmem>>, vector<1x2x3xf32>
    %114 = vector.shape_cast %113 : vector<1x2x3xf32> to vector<2x3xf32>
    %115 = arith.select %7, %111, %104 : vector<2x32xi1>, vector<2x32xf32>
    %116 = math.tanh %115 : vector<2x32xf32>
    %cst_61 = arith.constant dense<0.000000e+00> : vector<2x32xf32>
    %117 = tpu.matmul %116, %3, %cst_61 {dimension_numbers = #tpu.dot_dimension_numbers<[1], [0], [0], [1], [0, 0, 1, 1], [], []>} : vector<2x32xf32>, vector<32x32xf32>, vector<2x32xf32> -> vector<2x32xf32>
    %118 = arith.addf %115, %117 : vector<2x32xf32>
    %cst_62 = arith.constant dense<0.000000e+00> : vector<2x32xf32>
    %119 = tpu.matmul %114, %4, %cst_62 {dimension_numbers = #tpu.dot_dimension_numbers<[1], [0], [0], [1], [0, 0, 1, 1], [], []>} : vector<2x3xf32>, vector<3x32xf32>, vector<2x32xf32> -> vector<2x32xf32>
    %120 = arith.addf %118, %119 : vector<2x32xf32>
    %c7_i32 = arith.constant 7 : i32
    %121 = arith.index_cast %c7_i32 : i32 to index
    %c0_63 = arith.constant 0 : index
    %c0_64 = arith.constant 0 : index
    %122 = vector.load %arg7[%121, %c0_63, %c0_64] : memref<8x2x32xf32, #tpu.memory_space<vmem>>, vector<1x2x32xf32>
    %123 = vector.shape_cast %122 : vector<1x2x32xf32> to vector<2x32xf32>
    %124 = vector.shape_cast %120 : vector<2x32xf32> to vector<1x2x32xf32>
    tpu.vector_store %arg7[%121, %c0_63, %c0_64], %124 {strides = array<i32>} : memref<8x2x32xf32, #tpu.memory_space<vmem>>, vector<1x2x32xf32>,
    %125 = arith.index_cast %c7_i32 : i32 to index
    %c0_65 = arith.constant 0 : index
    %c0_66 = arith.constant 0 : index
    %126 = vector.load %arg5[%125, %c0_65, %c0_66] : memref<8x2x32xf32, #tpu.memory_space<vmem>>, vector<1x2x32xf32>
    %127 = vector.shape_cast %126 : vector<1x2x32xf32> to vector<2x32xf32>
    %128 = arith.index_cast %c7_i32 : i32 to index
    %c0_67 = arith.constant 0 : index
    %c0_68 = arith.constant 0 : index
    %129 = vector.load %arg6[%128, %c0_67, %c0_68] : memref<8x2x3xf32, #tpu.memory_space<vmem>>, vector<1x2x3xf32>
    %130 = vector.shape_cast %129 : vector<1x2x3xf32> to vector<2x3xf32>
    %131 = arith.select %7, %127, %120 : vector<2x32xi1>, vector<2x32xf32>
    %132 = math.tanh %131 : vector<2x32xf32>
    %cst_69 = arith.constant dense<0.000000e+00> : vector<2x32xf32>
    %133 = tpu.matmul %132, %3, %cst_69 {dimension_numbers = #tpu.dot_dimension_numbers<[1], [0], [0], [1], [0, 0, 1, 1], [], []>} : vector<2x32xf32>, vector<32x32xf32>, vector<2x32xf32> -> vector<2x32xf32>
    %134 = arith.addf %131, %133 : vector<2x32xf32>
    %cst_70 = arith.constant dense<0.000000e+00> : vector<2x32xf32>
    %135 = tpu.matmul %130, %4, %cst_70 {dimension_numbers = #tpu.dot_dimension_numbers<[1], [0], [0], [1], [0, 0, 1, 1], [], []>} : vector<2x3xf32>, vector<3x32xf32>, vector<2x32xf32> -> vector<2x32xf32>
    %136 = arith.addf %134, %135 : vector<2x32xf32>
    %c8_i32 = arith.constant 8 : i32
    %c0_71 = arith.constant 0 : index
    %c0_72 = arith.constant 0 : index
    %137 = vector.load %arg11[%c0_71, %c0_72] : memref<2x32xf32, #tpu.memory_space<vmem>>, vector<2x32xf32>
    tpu.vector_store %arg11[%c0_71, %c0_72], %136 {strides = array<i32>} : memref<2x32xf32, #tpu.memory_space<vmem>>, vector<2x32xf32>,
    return
  }
  func.func @transform_0(%arg0: i32, %arg1: i32) -> (i32, i32) {
    %c0_i32 = arith.constant 0 : i32
    %c0_i32_0 = arith.constant 0 : i32
    return %arg0, %c0_i32 : i32, i32
  }
  func.func @transform_3(%arg0: i32, %arg1: i32) -> (i32, i32, i32) {
    %c0_i32 = arith.constant 0 : i32
    %c0_i32_0 = arith.constant 0 : i32
    return %arg1, %arg0, %c0_i32 : i32, i32, i32
  }
  func.func @transform_4(%arg0: i32, %arg1: i32) -> (i32, i32, i32) {
    %c0_i32 = arith.constant 0 : i32
    %c0_i32_0 = arith.constant 0 : i32
    return %arg1, %arg0, %c0_i32 : i32, i32, i32
  }
  func.func @transform_5(%arg0: i32, %arg1: i32) -> (i32, i32, i32) {
    %c0_i32 = arith.constant 0 : i32
    %c0_i32_0 = arith.constant 0 : i32
    return %arg1, %arg0, %c0_i32 : i32, i32, i32
  }
}

</mosaic_0001>

<llo_original>
// kernel: tpu_custom_call.1
$region0: #{tpu_custom_call.1}
  #allocation0 [shape = 'u32[]', space=smem, size = 0x4, offset = 0x4, fixed_abs, tag = 'smem constant byte address 0x4 - core index']
  #allocation1 [shape = 'u32[72,128]{1,0:T(1,128)}', space=vmem, size = 0x9000, scoped, tag = 'internal scratch']
  #allocation2 [shape = 'f32[32,32]{1,0:T(8,128)}', space=vmem, size = 0x4000, scoped, tag = 'scratch operand']
  #allocation3 [shape = 'f32[3,32]{1,0:T(4,128)}', space=vmem, size = 0x800, scoped, tag = 'scratch operand']
  #allocation4 [shape = 's32[2]{0}', space=sflag, size = 0x8, scoped, tag = 'scratch operand']
  #allocation5 [shape = 'f32[2,32]{1,0:T(2,128)}', space=vmem, size = 0x400, scoped, tag = 'scratch operand']
  #allocation8 [shape = 's32[]', space=sflag, size = 0x4, offset = 0, fixed_abs, tag = 'sflag constant byte address 0x0 - dummy sync flag']
  #allocation9 [shape = 's32[]', space=sflag, size = 0x4, offset = 0, fixed_abs, tag = 'sflag constant byte address 0x0 - dummy sync flag']
  #allocation10 [shape = 'u32[]', space=smem, size = 0x4, offset = 0x44, fixed_abs, tag = 'smem constant byte address 0x44 - assertion arg 0']
  #allocation11 [shape = 'u32[]', space=smem, size = 0x4, offset = 0x48, fixed_abs, tag = 'smem constant byte address 0x48 - assertion arg 1']
  #allocation12 [shape = 's32[]', space=sflag, size = 0x4, offset = 0, fixed_abs, tag = 'sflag constant byte address 0x0 - dummy sync flag']
  %s0 = inlined_call_operand.vmem [shape: f32[2,32], index: 0, kind: input, shape index: {}]
  %s1 = inlined_call_operand.hbm [shape: f32[32,32], index: 1, kind: input, shape index: {}]
  %s2 = inlined_call_operand.vmem [shape: f32[3,32], index: 2, kind: input, shape index: {}]
  %s3 = inlined_call_operand.vmem [shape: f32[8,2,32], index: 3, kind: input, shape index: {}]
  %s4 = inlined_call_operand.vmem [shape: f32[8,2,3], index: 4, kind: input, shape index: {}]
  %s5 = inlined_call_operand.hbm [shape: f32[8,2,32], index: 5, kind: output, shape index: {}]
  %s6 = sld [smem:[#allocation0]]
  $region60: #{tpu_custom_call.1} parent=0
    _
  %s8 = ssub.s32 1, %s6
  %s9 = scalar_select 0, %s8, %s6
  $region1: #{tpu_custom_call.1} parent=0
    #allocation6 [shape = 'u8[8192]{0}', space=vmem, size = 0x2000, scoped, tag = 'output window, operand 0, single buffered']
    #allocation7 [shape = 's32[1]{0}', space=sflag, size = 0x4, scoped, tag = 'scoped memory for tpu_custom_call.1']
    %10 = vsyncpa [#allocation7], 0
    // Predicated region
    $region2: #{tpu_custom_call.1} parent=1 // pred_check
      _
    $region3: #{tpu_custom_call.1} parent=1 // pred_check_branch
      %12 = sbr.rel (0) target = $region5
    $region4: #{tpu_custom_call.1} parent=1 // pred_region
      _
    $region5: #{tpu_custom_call.1} parent=1 // pred_fallthru
      _
    // Predicated region
    $region6: #{tpu_custom_call.1} parent=1 // pred_check
      _
    $region7: #{tpu_custom_call.1} parent=1 // pred_check_branch
      %14 = sbr.rel (0) target = $region9
    $region8: #{tpu_custom_call.1} parent=1 // pred_region
      _
    $region9: #{tpu_custom_call.1} parent=1 // pred_fallthru
      _
    // Predicated region
    $region10: #{tpu_custom_call.1} parent=1 // pred_check
      _
    $region11: #{tpu_custom_call.1} parent=1 // pred_check_branch
      %16 = sbr.rel (0) target = $region13
    $region12: #{tpu_custom_call.1} parent=1 // pred_region
      _
    $region13: #{tpu_custom_call.1} parent=1 // pred_fallthru
      _
    %p17 = scmp.eq.s32.totalorder 0, 0
    // Predicated region
    $region14: #{tpu_custom_call.1} parent=1 // pred_check
      %p18 = pneg %p17
    $region15: #{tpu_custom_call.1} parent=1 // pred_check_branch
      %20 = sbr.rel (%p18) target = $region17
    $region16: #{tpu_custom_call.1} parent=1 // pred_region
      %v21 = vld [vmem:[%s0] sm:$0x3]
      %vm22 = vcmask 254976
      %23 = vst.msk [vmem:[#allocation5] sm:$0x3] %vm22, %v21
      // Predicated region
      $region18: #{tpu_custom_call.1} parent=16 // pred_check
        _
      $region19: #{tpu_custom_call.1} parent=16 // pred_check_branch
        %25 = sbr.rel target = $region21
      $region20: #{tpu_custom_call.1} parent=16 // pred_region
        %26 = sst [smem:[#allocation10]] [#allocation9]
        %27 = sst [smem:[#allocation11]] [#allocation8]
      $region21: #{tpu_custom_call.1} parent=16 // pred_fallthru
        _
      %29 = shalt.err (0)
      %s31 = sshll.u32 %s1, 4
      %s32 = int_to_ptr.hbm [resolvable:$true] %s31
      %s33 = sshll.u32 [#allocation2], 4
      %s34 = int_to_ptr.vmem [resolvable:$true] %s33
      %36 = dma.hbm_to_vmem [thread:$0]  %s32, 512, %s34, [#allocation4]
      %s37 = scalar_lea.sflag [#allocation4], 1
      // Predicated region
      $region22: #{tpu_custom_call.1} parent=16 // pred_check
        _
      $region23: #{tpu_custom_call.1} parent=16 // pred_check_branch
        %39 = sbr.rel target = $region25
      $region24: #{tpu_custom_call.1} parent=16 // pred_region
        // Predicated region
        $region37: #{tpu_custom_call.1} parent=24 // pred_check
          _
        $region38: #{tpu_custom_call.1} parent=24 // pred_check_branch
          %55 = sbr.rel (0) target = $region40
        $region39: #{tpu_custom_call.1} parent=24 // pred_region
          %s57 = ssub.s32 8, 1
          loop: start=0, step=1, limit=1
          $region41: #{tpu_custom_call.1} parent=39 // loop_pre_header
            _
          $region42: #{tpu_custom_call.1} parent=39 // loop_header
            %s59 = sphi 0, %s63
            %p60 = scmp.ge.s32.totalorder %s59, 1
            %s64 = sphi %s2, %s2
            %s65 = sphi [#allocation3], [#allocation3]
          $region43: #{tpu_custom_call.1} parent=39 // loop_header_branch
            %62 = sbr.rel (%p60) target = $region47
          $region44: #{tpu_custom_call.1} parent=39 // loop_body
            %v66 = vld [vmem:[%s64] sm:%s57]
            %67 = vst [vmem:[%s65] sm:%s57] %v66
          $region45: #{tpu_custom_call.1} parent=39 // loop_footer
            %s63 = sadd.s32 1, %s59
          $region46: #{tpu_custom_call.1} parent=39 // loop_footer_branch
            %58 = sbr.rel target = $region42
          $region47: #{tpu_custom_call.1} parent=39 // loop_exit
            _
        $region40: #{tpu_custom_call.1} parent=24 // pred_fallthru
          _
      $region25: #{tpu_custom_call.1} parent=16 // pred_fallthru
        _
      // Predicated region
      $region26: #{tpu_custom_call.1} parent=16 // pred_check
        _
      $region27: #{tpu_custom_call.1} parent=16 // pred_check_branch
        %41 = sbr.rel (0) target = $region29
      $region28: #{tpu_custom_call.1} parent=16 // pred_region
        %s43 = ssub.s32 8, 1
        loop: start=0, step=1, limit=1
        $region30: #{tpu_custom_call.1} parent=28 // loop_pre_header
          _
        $region31: #{tpu_custom_call.1} parent=28 // loop_header
          %s45 = sphi 0, %s49
          %p46 = scmp.ge.s32.totalorder %s45, 1
          %s50 = sphi %s2, %s2
          %s51 = sphi [#allocation3], [#allocation3]
        $region32: #{tpu_custom_call.1} parent=28 // loop_header_branch
          %48 = sbr.rel (%p46) target = $region36
        $region33: #{tpu_custom_call.1} parent=28 // loop_body
          %v52 = vld [vmem:[%s50] sm:%s43]
          %53 = vst [vmem:[%s51] sm:%s43] %v52
        $region34: #{tpu_custom_call.1} parent=28 // loop_footer
          %s49 = sadd.s32 1, %s45
        $region35: #{tpu_custom_call.1} parent=28 // loop_footer_branch
          %44 = sbr.rel target = $region31
        $region36: #{tpu_custom_call.1} parent=28 // loop_exit
          _
      $region29: #{tpu_custom_call.1} parent=16 // pred_fallthru
        _
      // Predicated region
      $region48: #{tpu_custom_call.1} parent=16 // pred_check
        _
      $region49: #{tpu_custom_call.1} parent=16 // pred_check_branch
        %70 = sbr.rel (0) target = $region51
      $region50: #{tpu_custom_call.1} parent=16 // pred_region
        %71 = vsyncadd %s37, 48
      $region51: #{tpu_custom_call.1} parent=16 // pred_fallthru
        _
      %s72 = smul.u32 32, 1
      %s73 = sshll.u32 %s72, 4
      %74 = dma.done [#allocation4], %s73
      %s75 = smul.u32 3, 1
      %s76 = sshll.u32 %s75, 4
      %77 = dma.done %s37, %s76
    $region17: #{tpu_custom_call.1} parent=1 // pred_fallthru
      _
    %v78 = vld [vmem:[#allocation2] sm:$0xff]
    %v79 = vld [vmem:[#allocation2 + $0x8] sm:$0xff]
    %v80 = vld [vmem:[#allocation2 + $0x10] sm:$0xff]
    %v81 = vld [vmem:[#allocation2 + $0x18] sm:$0xff]
    %v82 = vld [vmem:[#allocation3] sm:$0x7]
    %v83 = vlaneseq
    %v84 = vand.u32 %v83, 127
    %vm85 = vcmp.lt.s32.totalorder %v84, 4
    %v86 = vld [vmem:[#allocation5] sm:$0x3]
    %vm87 = vcmask 254976
    %88 = vst.msk [vmem:[#allocation6] sm:$0x3] %vm87, %v86
    %v89 = vld [vmem:[%s3] sm:$0x3]
    %v90 = vld [vmem:[%s4] sm:$0x3]
    %v91 = vsel %vm85, %v89, %v86
    %v92 = vtanh.pop %v91
    %vm93 = vcmask 261120
    %v95 = vsel %vm93, %v92, 0
    %97 = vmatpush.msra.mxu0 0.0
    %98 = vmatpush.msra.mxu0 0.0
    %99 = vmatpush.msra.mxu0 0.0
    %100 = vmatpush.msra.mxu0 0.0
    %101 = vmatpush.msra.mxu0 0.0
    %102 = vmatpush.msra.mxu0 0.0
    %103 = vmatpush.msra.mxu0 0.0
    %104 = vmatpush.msra.mxu0 0.0
    %105 = vmatpush.msra.mxu0 0.0
    %106 = vmatpush.msra.mxu0 0.0
    %107 = vmatpush.msra.mxu0 0.0
    %108 = vmatpush.msra.mxu0 0.0
    %109 = vmatpush.msra.mxu0 %v81
    %110 = vmatpush.msra.mxu0 %v80
    %111 = vmatpush.msra.mxu0 %v79
    %112 = vmatpush.msra.mxu0 %v78
    %113 = vmatmul.f32.gmra.mxu0 %v95
    %v114 = vpop.f32.mrf.mxu0
    %v115 = vadd.f32 0.0, %v114
    %116 = vdwg.mxu0
    %v117 = vadd.f32 %v91, %v115
    %vm118 = vcmask 23552
    %v120 = vsel %vm118, %v90, 0
    %vm122 = vcmask 1042432
    %v124 = vsel %vm122, %v82, 0
    %126 = vmatpush.msra.mxu0 0.0
    %127 = vmatpush.msra.mxu0 0.0
    %128 = vmatpush.msra.mxu0 0.0
    %129 = vmatpush.msra.mxu0 0.0
    %130 = vmatpush.msra.mxu0 0.0
    %131 = vmatpush.msra.mxu0 0.0
    %132 = vmatpush.msra.mxu0 0.0
    %133 = vmatpush.msra.mxu0 0.0
    %134 = vmatpush.msra.mxu0 0.0
    %135 = vmatpush.msra.mxu0 0.0
    %136 = vmatpush.msra.mxu0 0.0
    %137 = vmatpush.msra.mxu0 0.0
    %138 = vmatpush.msra.mxu0 0.0
    %139 = vmatpush.msra.mxu0 0.0
    %140 = vmatpush.msra.mxu0 0.0
    %141 = vmatpush.msra.mxu0 %v124
    %142 = vmatmul.f32.gmra.mxu0 %v120
    %v143 = vpop.f32.mrf.mxu0
    %v144 = vadd.f32 0.0, %v143
    %145 = vdwg.mxu0
    %v146 = vadd.f32 %v117, %v144
    %s147 = scalar_lea.vmem [#allocation6], 2
    %148 = vst.msk [vmem:[%s147] sm:$0x3] %vm87, %v146
    %s149 = scalar_lea.vmem %s3, 2
    %v150 = vld [vmem:[%s149] sm:$0x3]
    %s151 = scalar_lea.vmem %s4, 2
    %v152 = vld [vmem:[%s151] sm:$0x3]
    %v153 = vsel %vm85, %v150, %v146
    %v154 = vtanh.pop %v153
    %v156 = vsel %vm93, %v154, 0
    %158 = vmatpush.msra.mxu0 0.0
    %159 = vmatpush.msra.mxu0 0.0
    %160 = vmatpush.msra.mxu0 0.0
    %161 = vmatpush.msra.mxu0 0.0
    %162 = vmatpush.msra.mxu0 0.0
    %163 = vmatpush.msra.mxu0 0.0
    %164 = vmatpush.msra.mxu0 0.0
    %165 = vmatpush.msra.mxu0 0.0
    %166 = vmatpush.msra.mxu0 0.0
    %167 = vmatpush.msra.mxu0 0.0
    %168 = vmatpush.msra.mxu0 0.0
    %169 = vmatpush.msra.mxu0 0.0
    %170 = vmatpush.msra.mxu0 %v81
    %171 = vmatpush.msra.mxu0 %v80
    %172 = vmatpush.msra.mxu0 %v79
    %173 = vmatpush.msra.mxu0 %v78
    %174 = vmatmul.f32.gmra.mxu0 %v156
    %v175 = vpop.f32.mrf.mxu0
    %v176 = vadd.f32 0.0, %v175
    %177 = vdwg.mxu0
    %v178 = vadd.f32 %v153, %v176
    %v180 = vsel %vm118, %v152, 0
    %182 = vmatpush.msra.mxu0 0.0
    %183 = vmatpush.msra.mxu0 0.0
    %184 = vmatpush.msra.mxu0 0.0
    %185 = vmatpush.msra.mxu0 0.0
    %186 = vmatpush.msra.mxu0 0.0
    %187 = vmatpush.msra.mxu0 0.0
    %188 = vmatpush.msra.mxu0 0.0
    %189 = vmatpush.msra.mxu0 0.0
    %190 = vmatpush.msra.mxu0 0.0
    %191 = vmatpush.msra.mxu0 0.0
    %192 = vmatpush.msra.mxu0 0.0
    %193 = vmatpush.msra.mxu0 0.0
    %194 = vmatpush.msra.mxu0 0.0
    %195 = vmatpush.msra.mxu0 0.0
    %196 = vmatpush.msra.mxu0 0.0
    %197 = vmatpush.msra.mxu0 %v124
    %198 = vmatmul.f32.gmra.mxu0 %v180
    %v199 = vpop.f32.mrf.mxu0
    %v200 = vadd.f32 0.0, %v199
    %201 = vdwg.mxu0
    %v202 = vadd.f32 %v178, %v200
    %s203 = scalar_lea.vmem [#allocation6], 4
    %204 = vst.msk [vmem:[%s203] sm:$0x3] %vm87, %v202
    %s205 = scalar_lea.vmem %s3, 4
    %v206 = vld [vmem:[%s205] sm:$0x3]
    %s207 = scalar_lea.vmem %s4, 4
    %v208 = vld [vmem:[%s207] sm:$0x3]
    %v209 = vsel %vm85, %v206, %v202
    %v210 = vtanh.pop %v209
    %v212 = vsel %vm93, %v210, 0
    %214 = vmatpush.msra.mxu0 0.0
    %215 = vmatpush.msra.mxu0 0.0
    %216 = vmatpush.msra.mxu0 0.0
    %217 = vmatpush.msra.mxu0 0.0
    %218 = vmatpush.msra.mxu0 0.0
    %219 = vmatpush.msra.mxu0 0.0
    %220 = vmatpush.msra.mxu0 0.0
    %221 = vmatpush.msra.mxu0 0.0
    %222 = vmatpush.msra.mxu0 0.0
    %223 = vmatpush.msra.mxu0 0.0
    %224 = vmatpush.msra.mxu0 0.0
    %225 = vmatpush.msra.mxu0 0.0
    %226 = vmatpush.msra.mxu0 %v81
    %227 = vmatpush.msra.mxu0 %v80
    %228 = vmatpush.msra.mxu0 %v79
    %229 = vmatpush.msra.mxu0 %v78
    %230 = vmatmul.f32.gmra.mxu0 %v212
    %v231 = vpop.f32.mrf.mxu0
    %v232 = vadd.f32 0.0, %v231
    %233 = vdwg.mxu0
    %v234 = vadd.f32 %v209, %v232
    %v236 = vsel %vm118, %v208, 0
    %238 = vmatpush.msra.mxu0 0.0
    %239 = vmatpush.msra.mxu0 0.0
    %240 = vmatpush.msra.mxu0 0.0
    %241 = vmatpush.msra.mxu0 0.0
    %242 = vmatpush.msra.mxu0 0.0
    %243 = vmatpush.msra.mxu0 0.0
    %244 = vmatpush.msra.mxu0 0.0
    %245 = vmatpush.msra.mxu0 0.0
    %246 = vmatpush.msra.mxu0 0.0
    %247 = vmatpush.msra.mxu0 0.0
    %248 = vmatpush.msra.mxu0 0.0
    %249 = vmatpush.msra.mxu0 0.0
    %250 = vmatpush.msra.mxu0 0.0
    %251 = vmatpush.msra.mxu0 0.0
    %252 = vmatpush.msra.mxu0 0.0
    %253 = vmatpush.msra.mxu0 %v124
    %254 = vmatmul.f32.gmra.mxu0 %v236
    %v255 = vpop.f32.mrf.mxu0
    %v256 = vadd.f32 0.0, %v255
    %257 = vdwg.mxu0
    %v258 = vadd.f32 %v234, %v256
    %s259 = scalar_lea.vmem [#allocation6], 6
    %260 = vst.msk [vmem:[%s259] sm:$0x3] %vm87, %v258
    %s261 = scalar_lea.vmem %s3, 6
    %v262 = vld [vmem:[%s261] sm:$0x3]
    %s263 = scalar_lea.vmem %s4, 6
    %v264 = vld [vmem:[%s263] sm:$0x3]
    %v265 = vsel %vm85, %v262, %v258
    %v266 = vtanh.pop %v265
    %v268 = vsel %vm93, %v266, 0
    %270 = vmatpush.msra.mxu0 0.0
    %271 = vmatpush.msra.mxu0 0.0
    %272 = vmatpush.msra.mxu0 0.0
    %273 = vmatpush.msra.mxu0 0.0
    %274 = vmatpush.msra.mxu0 0.0
    %275 = vmatpush.msra.mxu0 0.0
    %276 = vmatpush.msra.mxu0 0.0
    %277 = vmatpush.msra.mxu0 0.0
    %278 = vmatpush.msra.mxu0 0.0
    %279 = vmatpush.msra.mxu0 0.0
    %280 = vmatpush.msra.mxu0 0.0
    %281 = vmatpush.msra.mxu0 0.0
    %282 = vmatpush.msra.mxu0 %v81
    %283 = vmatpush.msra.mxu0 %v80
    %284 = vmatpush.msra.mxu0 %v79
    %285 = vmatpush.msra.mxu0 %v78
    %286 = vmatmul.f32.gmra.mxu0 %v268
    %v287 = vpop.f32.mrf.mxu0
    %v288 = vadd.f32 0.0, %v287
    %289 = vdwg.mxu0
    %v290 = vadd.f32 %v265, %v288
    %v292 = vsel %vm118, %v264, 0
    %294 = vmatpush.msra.mxu0 0.0
    %295 = vmatpush.msra.mxu0 0.0
    %296 = vmatpush.msra.mxu0 0.0
    %297 = vmatpush.msra.mxu0 0.0
    %298 = vmatpush.msra.mxu0 0.0
    %299 = vmatpush.msra.mxu0 0.0
    %300 = vmatpush.msra.mxu0 0.0
    %301 = vmatpush.msra.mxu0 0.0
    %302 = vmatpush.msra.mxu0 0.0
    %303 = vmatpush.msra.mxu0 0.0
    %304 = vmatpush.msra.mxu0 0.0
    %305 = vmatpush.msra.mxu0 0.0
    %306 = vmatpush.msra.mxu0 0.0
    %307 = vmatpush.msra.mxu0 0.0
    %308 = vmatpush.msra.mxu0 0.0
    %309 = vmatpush.msra.mxu0 %v124
    %310 = vmatmul.f32.gmra.mxu0 %v292
    %v311 = vpop.f32.mrf.mxu0
    %v312 = vadd.f32 0.0, %v311
    %313 = vdwg.mxu0
    %v314 = vadd.f32 %v290, %v312
    %s315 = scalar_lea.vmem [#allocation6], 8
    %316 = vst.msk [vmem:[%s315] sm:$0x3] %vm87, %v314
    %s317 = scalar_lea.vmem %s3, 8
    %v318 = vld [vmem:[%s317] sm:$0x3]
    %s319 = scalar_lea.vmem %s4, 8
    %v320 = vld [vmem:[%s319] sm:$0x3]
    %v321 = vsel %vm85, %v318, %v314
    %v322 = vtanh.pop %v321
    %v324 = vsel %vm93, %v322, 0
    %326 = vmatpush.msra.mxu0 0.0
    %327 = vmatpush.msra.mxu0 0.0
    %328 = vmatpush.msra.mxu0 0.0
    %329 = vmatpush.msra.mxu0 0.0
    %330 = vmatpush.msra.mxu0 0.0
    %331 = vmatpush.msra.mxu0 0.0
    %332 = vmatpush.msra.mxu0 0.0
    %333 = vmatpush.msra.mxu0 0.0
    %334 = vmatpush.msra.mxu0 0.0
    %335 = vmatpush.msra.mxu0 0.0
    %336 = vmatpush.msra.mxu0 0.0
    %337 = vmatpush.msra.mxu0 0.0
    %338 = vmatpush.msra.mxu0 %v81
    %339 = vmatpush.msra.mxu0 %v80
    %340 = vmatpush.msra.mxu0 %v79
    %341 = vmatpush.msra.mxu0 %v78
    %342 = vmatmul.f32.gmra.mxu0 %v324
    %v343 = vpop.f32.mrf.mxu0
    %v344 = vadd.f32 0.0, %v343
    %345 = vdwg.mxu0
    %v346 = vadd.f32 %v321, %v344
    %v348 = vsel %vm118, %v320, 0
    %350 = vmatpush.msra.mxu0 0.0
    %351 = vmatpush.msra.mxu0 0.0
    %352 = vmatpush.msra.mxu0 0.0
    %353 = vmatpush.msra.mxu0 0.0
    %354 = vmatpush.msra.mxu0 0.0
    %355 = vmatpush.msra.mxu0 0.0
    %356 = vmatpush.msra.mxu0 0.0
    %357 = vmatpush.msra.mxu0 0.0
    %358 = vmatpush.msra.mxu0 0.0
    %359 = vmatpush.msra.mxu0 0.0
    %360 = vmatpush.msra.mxu0 0.0
    %361 = vmatpush.msra.mxu0 0.0
    %362 = vmatpush.msra.mxu0 0.0
    %363 = vmatpush.msra.mxu0 0.0
    %364 = vmatpush.msra.mxu0 0.0
    %365 = vmatpush.msra.mxu0 %v124
    %366 = vmatmul.f32.gmra.mxu0 %v348
    %v367 = vpop.f32.mrf.mxu0
    %v368 = vadd.f32 0.0, %v367
    %369 = vdwg.mxu0
    %v370 = vadd.f32 %v346, %v368
    %s371 = scalar_lea.vmem [#allocation6], 10
    %372 = vst.msk [vmem:[%s371] sm:$0x3] %vm87, %v370
    %s373 = scalar_lea.vmem %s3, 10
    %v374 = vld [vmem:[%s373] sm:$0x3]
    %s375 = scalar_lea.vmem %s4, 10
    %v376 = vld [vmem:[%s375] sm:$0x3]
    %v377 = vsel %vm85, %v374, %v370
    %v378 = vtanh.pop %v377
    %v380 = vsel %vm93, %v378, 0
    %382 = vmatpush.msra.mxu0 0.0
    %383 = vmatpush.msra.mxu0 0.0
    %384 = vmatpush.msra.mxu0 0.0
    %385 = vmatpush.msra.mxu0 0.0
    %386 = vmatpush.msra.mxu0 0.0
    %387 = vmatpush.msra.mxu0 0.0
    %388 = vmatpush.msra.mxu0 0.0
    %389 = vmatpush.msra.mxu0 0.0
    %390 = vmatpush.msra.mxu0 0.0
    %391 = vmatpush.msra.mxu0 0.0
    %392 = vmatpush.msra.mxu0 0.0
    %393 = vmatpush.msra.mxu0 0.0
    %394 = vmatpush.msra.mxu0 %v81
    %395 = vmatpush.msra.mxu0 %v80
    %396 = vmatpush.msra.mxu0 %v79
    %397 = vmatpush.msra.mxu0 %v78
    %398 = vmatmul.f32.gmra.mxu0 %v380
    %v399 = vpop.f32.mrf.mxu0
    %v400 = vadd.f32 0.0, %v399
    %401 = vdwg.mxu0
    %v402 = vadd.f32 %v377, %v400
    %v404 = vsel %vm118, %v376, 0
    %406 = vmatpush.msra.mxu0 0.0
    %407 = vmatpush.msra.mxu0 0.0
    %408 = vmatpush.msra.mxu0 0.0
    %409 = vmatpush.msra.mxu0 0.0
    %410 = vmatpush.msra.mxu0 0.0
    %411 = vmatpush.msra.mxu0 0.0
    %412 = vmatpush.msra.mxu0 0.0
    %413 = vmatpush.msra.mxu0 0.0
    %414 = vmatpush.msra.mxu0 0.0
    %415 = vmatpush.msra.mxu0 0.0
    %416 = vmatpush.msra.mxu0 0.0
    %417 = vmatpush.msra.mxu0 0.0
    %418 = vmatpush.msra.mxu0 0.0
    %419 = vmatpush.msra.mxu0 0.0
    %420 = vmatpush.msra.mxu0 0.0
    %421 = vmatpush.msra.mxu0 %v124
    %422 = vmatmul.f32.gmra.mxu0 %v404
    %v423 = vpop.f32.mrf.mxu0
    %v424 = vadd.f32 0.0, %v423
    %425 = vdwg.mxu0
    %v426 = vadd.f32 %v402, %v424
    %s427 = scalar_lea.vmem [#allocation6], 12
    %428 = vst.msk [vmem:[%s427] sm:$0x3] %vm87, %v426
    %s429 = scalar_lea.vmem %s3, 12
    %v430 = vld [vmem:[%s429] sm:$0x3]
    %s431 = scalar_lea.vmem %s4, 12
    %v432 = vld [vmem:[%s431] sm:$0x3]
    %v433 = vsel %vm85, %v430, %v426
    %v434 = vtanh.pop %v433
    %v436 = vsel %vm93, %v434, 0
    %438 = vmatpush.msra.mxu0 0.0
    %439 = vmatpush.msra.mxu0 0.0
    %440 = vmatpush.msra.mxu0 0.0
    %441 = vmatpush.msra.mxu0 0.0
    %442 = vmatpush.msra.mxu0 0.0
    %443 = vmatpush.msra.mxu0 0.0
    %444 = vmatpush.msra.mxu0 0.0
    %445 = vmatpush.msra.mxu0 0.0
    %446 = vmatpush.msra.mxu0 0.0
    %447 = vmatpush.msra.mxu0 0.0
    %448 = vmatpush.msra.mxu0 0.0
    %449 = vmatpush.msra.mxu0 0.0
    %450 = vmatpush.msra.mxu0 %v81
    %451 = vmatpush.msra.mxu0 %v80
    %452 = vmatpush.msra.mxu0 %v79
    %453 = vmatpush.msra.mxu0 %v78
    %454 = vmatmul.f32.gmra.mxu0 %v436
    %v455 = vpop.f32.mrf.mxu0
    %v456 = vadd.f32 0.0, %v455
    %457 = vdwg.mxu0
    %v458 = vadd.f32 %v433, %v456
    %v460 = vsel %vm118, %v432, 0
    %462 = vmatpush.msra.mxu0 0.0
    %463 = vmatpush.msra.mxu0 0.0
    %464 = vmatpush.msra.mxu0 0.0
    %465 = vmatpush.msra.mxu0 0.0
    %466 = vmatpush.msra.mxu0 0.0
    %467 = vmatpush.msra.mxu0 0.0
    %468 = vmatpush.msra.mxu0 0.0
    %469 = vmatpush.msra.mxu0 0.0
    %470 = vmatpush.msra.mxu0 0.0
    %471 = vmatpush.msra.mxu0 0.0
    %472 = vmatpush.msra.mxu0 0.0
    %473 = vmatpush.msra.mxu0 0.0
    %474 = vmatpush.msra.mxu0 0.0
    %475 = vmatpush.msra.mxu0 0.0
    %476 = vmatpush.msra.mxu0 0.0
    %477 = vmatpush.msra.mxu0 %v124
    %478 = vmatmul.f32.gmra.mxu0 %v460
    %v479 = vpop.f32.mrf.mxu0
    %v480 = vadd.f32 0.0, %v479
    %481 = vdwg.mxu0
    %v482 = vadd.f32 %v458, %v480
    %s483 = scalar_lea.vmem [#allocation6], 14
    %484 = vst.msk [vmem:[%s483] sm:$0x3] %vm87, %v482
    %s485 = scalar_lea.vmem %s3, 14
    %v486 = vld [vmem:[%s485] sm:$0x3]
    %s487 = scalar_lea.vmem %s4, 14
    %v488 = vld [vmem:[%s487] sm:$0x3]
    %v489 = vsel %vm85, %v486, %v482
    %v490 = vtanh.pop %v489
    %v492 = vsel %vm93, %v490, 0
    %494 = vmatpush.msra.mxu0 0.0
    %495 = vmatpush.msra.mxu0 0.0
    %496 = vmatpush.msra.mxu0 0.0
    %497 = vmatpush.msra.mxu0 0.0
    %498 = vmatpush.msra.mxu0 0.0
    %499 = vmatpush.msra.mxu0 0.0
    %500 = vmatpush.msra.mxu0 0.0
    %501 = vmatpush.msra.mxu0 0.0
    %502 = vmatpush.msra.mxu0 0.0
    %503 = vmatpush.msra.mxu0 0.0
    %504 = vmatpush.msra.mxu0 0.0
    %505 = vmatpush.msra.mxu0 0.0
    %506 = vmatpush.msra.mxu0 %v81
    %507 = vmatpush.msra.mxu0 %v80
    %508 = vmatpush.msra.mxu0 %v79
    %509 = vmatpush.msra.mxu0 %v78
    %510 = vmatmul.f32.gmra.mxu0 %v492
    %v511 = vpop.f32.mrf.mxu0
    %v512 = vadd.f32 0.0, %v511
    %513 = vdwg.mxu0
    %v514 = vadd.f32 %v489, %v512
    %v516 = vsel %vm118, %v488, 0
    %518 = vmatpush.msra.mxu0 0.0
    %519 = vmatpush.msra.mxu0 0.0
    %520 = vmatpush.msra.mxu0 0.0
    %521 = vmatpush.msra.mxu0 0.0
    %522 = vmatpush.msra.mxu0 0.0
    %523 = vmatpush.msra.mxu0 0.0
    %524 = vmatpush.msra.mxu0 0.0
    %525 = vmatpush.msra.mxu0 0.0
    %526 = vmatpush.msra.mxu0 0.0
    %527 = vmatpush.msra.mxu0 0.0
    %528 = vmatpush.msra.mxu0 0.0
    %529 = vmatpush.msra.mxu0 0.0
    %530 = vmatpush.msra.mxu0 0.0
    %531 = vmatpush.msra.mxu0 0.0
    %532 = vmatpush.msra.mxu0 0.0
    %533 = vmatpush.msra.mxu0 %v124
    %534 = vmatmul.f32.gmra.mxu0 %v516
    %v535 = vpop.f32.mrf.mxu0
    %v536 = vadd.f32 0.0, %v535
    %537 = vdwg.mxu0
    %v538 = vadd.f32 %v514, %v536
    %539 = vst.msk [vmem:[#allocation5] sm:$0x3] %vm87, %v538
    // Predicated region
    $region52: #{tpu_custom_call.1} parent=1 // pred_check
      _
    $region53: #{tpu_custom_call.1} parent=1 // pred_check_branch
      %541 = sbr.rel (0) target = $region55
    $region54: #{tpu_custom_call.1} parent=1 // pred_region
      %543 = vsyncadd [#allocation7], 0
      %s544 = sshll.u32 [#allocation6], 4
      %s545 = int_to_ptr.vmem [resolvable:$true] %s544
      %s546 = sshll.u32 %s5, 4
      %s547 = int_to_ptr.hbm [resolvable:$true] %s546
      %552 = dma.vmem_to_hbm [thread:$0]  %s545, 256, %s547, [#allocation7], 32, 32, 2
    $region55: #{tpu_custom_call.1} parent=1 // pred_fallthru
      _
    // Predicated region
    $region56: #{tpu_custom_call.1} parent=1 // pred_check
      _
    $region57: #{tpu_custom_call.1} parent=1 // pred_check_branch
      %554 = sbr.rel (0) target = $region59
    $region58: #{tpu_custom_call.1} parent=1 // pred_region
      %556 = dma.done [#allocation7], 256
    $region59: #{tpu_custom_call.1} parent=1 // pred_fallthru
      _
    %557 = vsyncpa [#allocation7], 1
  %558 = vsyncmov [#allocation4]
  %s559 = vpop.sfrf %558
  %p560 = scmp.eq.s32.totalorder %s559, 0
  %p561 = pneg %p560
  %563 = shalt.err (%p561)
  %s564 = scalar_lea.sflag [#allocation4], 1
  %565 = vsyncmov %s564
  %s566 = vpop.sfrf %565
  %p567 = scmp.eq.s32.totalorder %s566, 0
  %p568 = pneg %p567
  %570 = shalt.err (%p568)

</llo_original>
